<compile_context>
chip_gen: v5e
topology: v5e:2x2
jax: 0.10.0
libtpu: 0.0.40
codegen_flags: <defaults>
</compile_context>

<pallas_src>
import functools

import jax
import jax.numpy as jnp
from jax import lax
from jax.experimental import pallas as pl
from jax.experimental.pallas import tpu as pltpu

_RANK1 = (((0,), (0,)), ((), ()))  # dot_general dims: contract leading axis


def _barlow_twins_kernel(img_ref, snd_ref, out_ref,
                         c_acc, sx_acc, sy_acc, ss_acc,
                         *, n_rows, n_feat, lambda_, reg_strength):
    i = pl.program_id(0)
    nb = pl.num_programs(0)
    dp = c_acc.shape[0]                      # padded (lane-dense) feature dim

    # ---------------- init accumulators on the first block --------------------
    @pl.when(i == 0)
    def _init():
        c_acc[...] = jnp.zeros_like(c_acc)
        sx_acc[...] = jnp.zeros_like(sx_acc)
        sy_acc[...] = jnp.zeros_like(sy_acc)
        ss_acc[...] = jnp.zeros_like(ss_acc)

    # ---------------- hot loop: raw correlation + column stats ----------------
    xb = img_ref[...]
    yb = snd_ref[...]
    # Contract over rows on the MXU: [TB, Dp] x [TB, Dp] -> [Dp, Dp].
    # Zero-padded rows contribute nothing to any of the raw sums below.
    c_acc[...] += lax.dot_general(xb, yb, _RANK1,
                                  preferred_element_type=jnp.float32)
    sx_acc[...] += jnp.sum(xb, axis=0, keepdims=True)
    sy_acc[...] += jnp.sum(yb, axis=0, keepdims=True)
    ss_acc[...] += jnp.sum(xb * xb + yb * yb, axis=0, keepdims=True)

    # ---------------- final block: center, scale, loss + KL -------------------
    @pl.when(i == nb - 1)
    def _finalize():
        n_f = jnp.float32(n_rows)
        two_n = jnp.float32(2 * n_rows)
        sx = sx_acc[...]                     # (1, Dp)   sum over rows of img
        sy = sy_acc[...]                     # (1, Dp)   sum over rows of snd
        mu = (sx + sy) / two_n
        # Unbiased variance over the 2N concatenated rows (torch.std default).
        var = (ss_acc[...] - two_n * mu * mu) / (two_n - 1.0)
        sig = jnp.sqrt(jnp.maximum(var, 0.0))
        if n_feat != dp:                     # compile-time: only if feature pad
            colv = lax.broadcasted_iota(jnp.int32, sig.shape, 1) < n_feat
            sig = jnp.where(colv, sig, 1.0)  # keep 1/sigma finite on padded cols
        inv_sig = 1.0 / sig                  # one-time (1, Dp) divide

        # Mean-centering as a rank-2 correction (two K=1 MXU outer products):
        #   corr_ij = C_raw_ij - Sx_i*mu_j + mu_i*(N*mu_j - Sy_j)
        corr = (c_acc[...]
                - lax.dot_general(sx, mu, _RANK1,
                                  preferred_element_type=jnp.float32)
                + lax.dot_general(mu, n_f * mu - sy, _RANK1,
                                  preferred_element_type=jnp.float32))

        r = lax.broadcasted_iota(jnp.int32, (dp, dp), 0)
        q = lax.broadcasted_iota(jnp.int32, (dp, dp), 1)
        diag = r == q

        # Symmetric 1/sigma scaling: c = diag(inv_sig) @ corr @ diag(inv_sig) / N
        # (diagonal-matrix sandwich on the MXU avoids any (D,1) relayouts).
        s_diag = jnp.where(diag, jnp.broadcast_to(inv_sig, (dp, dp)), 0.0)
        c = jnp.dot(s_diag,
                    jnp.dot(corr, s_diag, preferred_element_type=jnp.float32),
                    preferred_element_type=jnp.float32) / n_f

        tgt = jnp.where(diag, 1.0, 0.0)
        fac = jnp.where(diag, 1.0, lambda_)  # maximum(eye, lambda*ones)
        cdiff = (c - tgt) * (c - tgt) * fac
        if n_feat != dp:                     # mask padded rows/cols of c
            valid2 = (r < n_feat) & (q < n_feat)
            cdiff = jnp.where(valid2, cdiff, 0.0)
        loss = jnp.sum(cdiff)

        # KL(Normal(mu, sigma) || Normal(0, 1)); padded cols give exactly 0
        # (mu=0, sigma=1), so a plain sum / n_feat is the correct mean.
        kl = -jnp.log(sig) + 0.5 * (sig * sig + mu * mu) - 0.5
        reg = jnp.sum(kl) / jnp.float32(n_feat)

        out_ref[...] = jnp.full((1, 1), loss + reg_strength * reg,
                                dtype=out_ref.dtype)


def barlow_twins_loss(img, snd, *, lambda_=0.005, reg_strength=0.1,
                      block_rows=256):
    """img, snd: [N, D] float arrays -> scalar float32 BarlowTwins loss."""
    img = img.astype(jnp.float32)
    snd = snd.astype(jnp.float32)
    n, d = img.shape

    # Row block: sublane-aligned multiple of 8, clamped to N; feature dim
    # padded to a lane-dense multiple of 128.
    tb = min(block_rows, max(n, 8))
    tb = max(8, ((tb + 7) // 8) * 8)
    n_pad = pl.cdiv(n, tb) * tb
    d_pad = pl.cdiv(d, 128) * 128
    if (n_pad, d_pad) != (n, d):
        img = jnp.pad(img, ((0, n_pad - n), (0, d_pad - d)))
        snd = jnp.pad(snd, ((0, n_pad - n), (0, d_pad - d)))
    nb = n_pad // tb

    kernel = functools.partial(
        _barlow_twins_kernel,
        n_rows=n, n_feat=d, lambda_=lambda_, reg_strength=reg_strength)

    # VMEM budget: (Dp,Dp) accumulator + 3 stat rows + double-buffered input
    # tiles; set the scoped limit explicitly so bigger D / block_rows don't
    # trip the per-generation defaults (16/32 MiB).
    vmem_need = 4 * (d_pad * d_pad + 3 * d_pad) + 2 * 2 * tb * d_pad * 4
    vmem_limit = int(min(100 * 1024 * 1024,
                         max(32 * 1024 * 1024, 2 * vmem_need)))

    out = pl.pallas_call(
        kernel,
        out_shape=jax.ShapeDtypeStruct((1, 1), jnp.float32),
        grid=(nb,),                                   # single pass over rows
        in_specs=[
            pl.BlockSpec((tb, d_pad), lambda i: (i, 0)),
            pl.BlockSpec((tb, d_pad), lambda i: (i, 0)),
        ],
        out_specs=pl.BlockSpec((1, 1), lambda i: (0, 0)),
        scratch_shapes=[
            pltpu.VMEM((d_pad, d_pad), jnp.float32),  # C_raw accumulator
            pltpu.VMEM((1, d_pad), jnp.float32),      # sum(img)
            pltpu.VMEM((1, d_pad), jnp.float32),      # sum(snd)
            pltpu.VMEM((1, d_pad), jnp.float32),      # sum(img^2 + snd^2)
        ],
        compiler_params=pltpu.CompilerParams(
            dimension_semantics=("arbitrary",),
            vmem_limit_bytes=vmem_limit),
    )(img, snd)
    return out[0, 0]


def _reference_loss(img, snd, lambda_=0.005, reg_strength=0.1):
    # Pure-JAX mirror of the PyTorch module.
    n, d = img.shape
    concat = jnp.concatenate([img, snd], axis=0)
    mu = jnp.mean(concat, axis=0, keepdims=True)
    sigma = jnp.std(concat, axis=0, ddof=1, keepdims=True)   # torch.std: unbiased
    img_n = (img - mu) / sigma
    snd_n = (snd - mu) / sigma
    c = img_n.T @ snd_n / n
    eye = jnp.eye(d, dtype=jnp.float32)
    factors = jnp.maximum(eye, lambda_ * jnp.ones((d, d), jnp.float32))
    loss = jnp.sum((c - eye) ** 2 * factors)
    kl = -jnp.log(sigma) + 0.5 * (sigma ** 2 + mu ** 2) - 0.5
    return loss + reg_strength * jnp.mean(kl)


if __name__ == "__main__":
    key = jax.random.PRNGKey(0)
    k1, k2 = jax.random.split(key)

    # Case 1: N=200 with a 64-row block -> 4 row blocks + row padding
    # (exercises multi-block accumulation); D=128 is lane-dense.
    N, D = 200, 128
    img = jax.random.normal(k1, (N, D), dtype=jnp.float32)
    snd = 0.5 * img + 0.5 * jax.random.normal(k2, (N, D), dtype=jnp.float32)

    loss = jax.jit(functools.partial(barlow_twins_loss, block_rows=64))(img, snd)
    jax.block_until_ready(loss)
    ref = _reference_loss(img, snd)
    assert jnp.allclose(loss, ref, rtol=2e-4, atol=1e-3), (loss, ref)

    # Case 2: N=80, D=96 -> single row block, padded feature dim
    # (exercises the padded-column masking path).
    N2, D2 = 80, 96
    k3, k4 = jax.random.split(k2)
    img2 = jax.random.normal(k3, (N2, D2), dtype=jnp.float32)
    snd2 = 0.5 * img2 + 0.5 * jax.random.normal(k4, (N2, D2), dtype=jnp.float32)

    loss2 = jax.jit(barlow_twins_loss)(img2, snd2)
    jax.block_until_ready(loss2)
    ref2 = _reference_loss(img2, snd2)
    assert jnp.allclose(loss2, ref2, rtol=2e-4, atol=1e-3), (loss2, ref2)

    print("KERNEL_OK")
</pallas_src>

<mosaic_0001>
module attributes {stable_mosaic.version = 11 : i64} {
  func.func @_barlow_twins_kernel(%arg0: i32, %arg1: memref<64x128xf32, #tpu.memory_space<vmem>>, %arg2: memref<64x128xf32, #tpu.memory_space<vmem>>, %arg3: memref<1x1xf32, #tpu.memory_space<vmem>>, %arg4: memref<128x128xf32, #tpu.memory_space<vmem>>, %arg5: memref<1x128xf32, #tpu.memory_space<vmem>>, %arg6: memref<1x128xf32, #tpu.memory_space<vmem>>, %arg7: memref<1x128xf32, #tpu.memory_space<vmem>>) attributes {dimension_semantics = [#tpu.dimension_semantics<arbitrary>], iteration_bounds = array<i64: 4>, scalar_prefetch = 0 : i64, scratch_operands = 4 : i64, tpu.core_type = #tpu.core_type<tc>, window_params = [{transform_indices = @transform_0, window_bounds = array<i64: 64, 128>}, {transform_indices = @transform_1, window_bounds = array<i64: 64, 128>}, {pipeline_mode = #tpu.pipeline_mode<synchronous>, transform_indices = @transform_2, window_bounds = array<i64: 1, 1>}]} {
    %c0_i32 = arith.constant 0 : i32
    %0 = arith.cmpi eq, %arg0, %c0_i32 : i32
    %1 = arith.extui %0 : i1 to i32
    %c0_i32_0 = arith.constant 0 : i32
    %2 = arith.cmpi ne, %1, %c0_i32_0 : i32
    scf.if %2 {
      %cst_24 = arith.constant 0.000000e+00 : f32
      %30 = vector.broadcast %cst_24 : f32 to vector<128x128xf32>
      %c0_25 = arith.constant 0 : index
      %c0_26 = arith.constant 0 : index
      %31 = vector.load %arg4[%c0_25, %c0_26] : memref<128x128xf32, #tpu.memory_space<vmem>>, vector<128x128xf32>
      tpu.vector_store %arg4[%c0_25, %c0_26], %30 {strides = array<i32>} : memref<128x128xf32, #tpu.memory_space<vmem>>, vector<128x128xf32>,
      %cst_27 = arith.constant 0.000000e+00 : f32
      %32 = vector.broadcast %cst_27 : f32 to vector<1x128xf32>
      %c0_28 = arith.constant 0 : index
      %c0_29 = arith.constant 0 : index
      %33 = vector.load %arg5[%c0_28, %c0_29] : memref<1x128xf32, #tpu.memory_space<vmem>>, vector<1x128xf32>
      tpu.vector_store %arg5[%c0_28, %c0_29], %32 {strides = array<i32>} : memref<1x128xf32, #tpu.memory_space<vmem>>, vector<1x128xf32>,
      %cst_30 = arith.constant 0.000000e+00 : f32
      %34 = vector.broadcast %cst_30 : f32 to vector<1x128xf32>
      %c0_31 = arith.constant 0 : index
      %c0_32 = arith.constant 0 : index
      %35 = vector.load %arg6[%c0_31, %c0_32] : memref<1x128xf32, #tpu.memory_space<vmem>>, vector<1x128xf32>
      tpu.vector_store %arg6[%c0_31, %c0_32], %34 {strides = array<i32>} : memref<1x128xf32, #tpu.memory_space<vmem>>, vector<1x128xf32>,
      %cst_33 = arith.constant 0.000000e+00 : f32
      %36 = vector.broadcast %cst_33 : f32 to vector<1x128xf32>
      %c0_34 = arith.constant 0 : index
      %c0_35 = arith.constant 0 : index
      %37 = vector.load %arg7[%c0_34, %c0_35] : memref<1x128xf32, #tpu.memory_space<vmem>>, vector<1x128xf32>
      tpu.vector_store %arg7[%c0_34, %c0_35], %36 {strides = array<i32>} : memref<1x128xf32, #tpu.memory_space<vmem>>, vector<1x128xf32>,
    } else {
    }
    %c0 = arith.constant 0 : index
    %c0_1 = arith.constant 0 : index
    %3 = vector.load %arg1[%c0, %c0_1] : memref<64x128xf32, #tpu.memory_space<vmem>>, vector<64x128xf32>
    %c0_2 = arith.constant 0 : index
    %c0_3 = arith.constant 0 : index
    %4 = vector.load %arg2[%c0_2, %c0_3] : memref<64x128xf32, #tpu.memory_space<vmem>>, vector<64x128xf32>
    %c0_4 = arith.constant 0 : index
    %c0_5 = arith.constant 0 : index
    %5 = vector.load %arg4[%c0_4, %c0_5] : memref<128x128xf32, #tpu.memory_space<vmem>>, vector<128x128xf32>
    %cst = arith.constant dense<0.000000e+00> : vector<128x128xf32>
    %6 = tpu.matmul %3, %4, %cst {dimension_numbers = #tpu.dot_dimension_numbers<[0], [0], [1], [1], [0, 1, 1, 1], [], []>} : vector<64x128xf32>, vector<64x128xf32>, vector<128x128xf32> -> vector<128x128xf32>
    %7 = arith.addf %5, %6 : vector<128x128xf32>
    %c0_6 = arith.constant 0 : index
    %c0_7 = arith.constant 0 : index
    %8 = vector.load %arg4[%c0_6, %c0_7] : memref<128x128xf32, #tpu.memory_space<vmem>>, vector<128x128xf32>
    tpu.vector_store %arg4[%c0_6, %c0_7], %7 {strides = array<i32>} : memref<128x128xf32, #tpu.memory_space<vmem>>, vector<128x128xf32>,
    %c0_8 = arith.constant 0 : index
    %c0_9 = arith.constant 0 : index
    %9 = vector.load %arg5[%c0_8, %c0_9] : memref<1x128xf32, #tpu.memory_space<vmem>>, vector<1x128xf32>
    %cst_10 = arith.constant dense<0.000000e+00> : vector<128xf32>
    %10 = vector.multi_reduction <add>, %3, %cst_10 [0] : vector<64x128xf32> to vector<128xf32>
    %11 = vector.shape_cast %10 : vector<128xf32> to vector<1x128xf32>
    %12 = arith.addf %9, %11 : vector<1x128xf32>
    %c0_11 = arith.constant 0 : index
    %c0_12 = arith.constant 0 : index
    %13 = vector.load %arg5[%c0_11, %c0_12] : memref<1x128xf32, #tpu.memory_space<vmem>>, vector<1x128xf32>
    tpu.vector_store %arg5[%c0_11, %c0_12], %12 {strides = array<i32>} : memref<1x128xf32, #tpu.memory_space<vmem>>, vector<1x128xf32>,
    %c0_13 = arith.constant 0 : index
    %c0_14 = arith.constant 0 : index
    %14 = vector.load %arg6[%c0_13, %c0_14] : memref<1x128xf32, #tpu.memory_space<vmem>>, vector<1x128xf32>
    %cst_15 = arith.constant dense<0.000000e+00> : vector<128xf32>
    %15 = vector.multi_reduction <add>, %4, %cst_15 [0] : vector<64x128xf32> to vector<128xf32>
    %16 = vector.shape_cast %15 : vector<128xf32> to vector<1x128xf32>
    %17 = arith.addf %14, %16 : vector<1x128xf32>
    %c0_16 = arith.constant 0 : index
    %c0_17 = arith.constant 0 : index
    %18 = vector.load %arg6[%c0_16, %c0_17] : memref<1x128xf32, #tpu.memory_space<vmem>>, vector<1x128xf32>
    tpu.vector_store %arg6[%c0_16, %c0_17], %17 {strides = array<i32>} : memref<1x128xf32, #tpu.memory_space<vmem>>, vector<1x128xf32>,
    %c0_18 = arith.constant 0 : index
    %c0_19 = arith.constant 0 : index
    %19 = vector.load %arg7[%c0_18, %c0_19] : memref<1x128xf32, #tpu.memory_space<vmem>>, vector<1x128xf32>
    %20 = arith.mulf %3, %3 : vector<64x128xf32>
    %21 = arith.mulf %4, %4 : vector<64x128xf32>
    %22 = arith.addf %20, %21 : vector<64x128xf32>
    %cst_20 = arith.constant dense<0.000000e+00> : vector<128xf32>
    %23 = vector.multi_reduction <add>, %22, %cst_20 [0] : vector<64x128xf32> to vector<128xf32>
    %24 = vector.shape_cast %23 : vector<128xf32> to vector<1x128xf32>
    %25 = arith.addf %19, %24 : vector<1x128xf32>
    %c0_21 = arith.constant 0 : index
    %c0_22 = arith.constant 0 : index
    %26 = vector.load %arg7[%c0_21, %c0_22] : memref<1x128xf32, #tpu.memory_space<vmem>>, vector<1x128xf32>
    tpu.vector_store %arg7[%c0_21, %c0_22], %25 {strides = array<i32>} : memref<1x128xf32, #tpu.memory_space<vmem>>, vector<1x128xf32>,
    %c3_i32 = arith.constant 3 : i32
    %27 = arith.cmpi eq, %arg0, %c3_i32 : i32
    %28 = arith.extui %27 : i1 to i32
    %c0_i32_23 = arith.constant 0 : i32
    %29 = arith.cmpi ne, %28, %c0_i32_23 : i32
    scf.if %29 {
      %c0_24 = arith.constant 0 : index
      %c0_25 = arith.constant 0 : index
      %30 = vector.load %arg5[%c0_24, %c0_25] : memref<1x128xf32, #tpu.memory_space<vmem>>, vector<1x128xf32>
      %c0_26 = arith.constant 0 : index
      %c0_27 = arith.constant 0 : index
      %31 = vector.load %arg6[%c0_26, %c0_27] : memref<1x128xf32, #tpu.memory_space<vmem>>, vector<1x128xf32>
      %32 = arith.addf %30, %31 : vector<1x128xf32>
      %cst_28 = arith.constant 4.000000e+02 : f32
      %33 = vector.broadcast %cst_28 : f32 to vector<1x128xf32>
      %34 = arith.divf %32, %33 : vector<1x128xf32>
      %c0_29 = arith.constant 0 : index
      %c0_30 = arith.constant 0 : index
      %35 = vector.load %arg7[%c0_29, %c0_30] : memref<1x128xf32, #tpu.memory_space<vmem>>, vector<1x128xf32>
      %cst_31 = arith.constant 4.000000e+02 : f32
      %36 = vector.broadcast %cst_31 : f32 to vector<1x128xf32>
      %37 = arith.mulf %36, %34 : vector<1x128xf32>
      %38 = arith.mulf %37, %34 : vector<1x128xf32>
      %39 = arith.subf %35, %38 : vector<1x128xf32>
      %cst_32 = arith.constant 4.000000e+02 : f32
      %cst_33 = arith.constant 1.000000e+00 : f32
      %40 = arith.subf %cst_32, %cst_33 : f32
      %41 = vector.broadcast %40 : f32 to vector<1x128xf32>
      %42 = arith.divf %39, %41 : vector<1x128xf32>
      %cst_34 = arith.constant 0.000000e+00 : f32
      %43 = vector.broadcast %cst_34 : f32 to vector<1x128xf32>
      %44 = arith.maximumf %42, %43 : vector<1x128xf32>
      %45 = math.sqrt %44 : vector<1x128xf32>
      %cst_35 = arith.constant 1.000000e+00 : f32
      %46 = vector.broadcast %cst_35 : f32 to vector<1x128xf32>
      %47 = arith.divf %46, %45 : vector<1x128xf32>
      %c0_36 = arith.constant 0 : index
      %c0_37 = arith.constant 0 : index
      %48 = vector.load %arg4[%c0_36, %c0_37] : memref<128x128xf32, #tpu.memory_space<vmem>>, vector<128x128xf32>
      %cst_38 = arith.constant dense<0.000000e+00> : vector<128x128xf32>
      %49 = tpu.matmul %30, %34, %cst_38 {dimension_numbers = #tpu.dot_dimension_numbers<[0], [0], [1], [1], [0, 1, 1, 1], [], []>} : vector<1x128xf32>, vector<1x128xf32>, vector<128x128xf32> -> vector<128x128xf32>
      %50 = arith.subf %48, %49 : vector<128x128xf32>
      %cst_39 = arith.constant 2.000000e+02 : f32
      %51 = vector.broadcast %cst_39 : f32 to vector<1x128xf32>
      %52 = arith.mulf %51, %34 : vector<1x128xf32>
      %53 = arith.subf %52, %31 : vector<1x128xf32>
      %cst_40 = arith.constant dense<0.000000e+00> : vector<128x128xf32>
      %54 = tpu.matmul %34, %53, %cst_40 {dimension_numbers = #tpu.dot_dimension_numbers<[0], [0], [1], [1], [0, 1, 1, 1], [], []>} : vector<1x128xf32>, vector<1x128xf32>, vector<128x128xf32> -> vector<128x128xf32>
      %55 = arith.addf %50, %54 : vector<128x128xf32>
      %56 = tpu.iota {dimensions = array<i32: 0>} : vector<128x128xi32>
      %57 = tpu.iota {dimensions = array<i32: 1>} : vector<128x128xi32>
      %58 = arith.cmpi eq, %56, %57 : vector<128x128xi32>
      %59 = vector.shape_cast %47 : vector<1x128xf32> to vector<1x128xf32>
      %60 = vector.broadcast %59 : vector<1x128xf32> to vector<128x128xf32>
      %cst_41 = arith.constant 0.000000e+00 : f32
      %61 = vector.broadcast %cst_41 : f32 to vector<128x128xf32>
      %62 = arith.select %58, %60, %61 : vector<128x128xi1>, vector<128x128xf32>
      %cst_42 = arith.constant dense<0.000000e+00> : vector<128x128xf32>
      %63 = tpu.matmul %55, %62, %cst_42 {dimension_numbers = #tpu.dot_dimension_numbers<[1], [0], [0], [1], [0, 0, 1, 1], [], []>} : vector<128x128xf32>, vector<128x128xf32>, vector<128x128xf32> -> vector<128x128xf32>
      %cst_43 = arith.constant dense<0.000000e+00> : vector<128x128xf32>
      %64 = tpu.matmul %62, %63, %cst_43 {dimension_numbers = #tpu.dot_dimension_numbers<[1], [0], [0], [1], [0, 0, 1, 1], [], []>} : vector<128x128xf32>, vector<128x128xf32>, vector<128x128xf32> -> vector<128x128xf32>
      %cst_44 = arith.constant 2.000000e+02 : f32
      %65 = vector.broadcast %cst_44 : f32 to vector<128x128xf32>
      %66 = arith.divf %64, %65 : vector<128x128xf32>
      %cst_45 = arith.constant 1.000000e+00 : f32
      %cst_46 = arith.constant 0.000000e+00 : f32
      %67 = vector.broadcast %cst_45 : f32 to vector<128x128xf32>
      %68 = vector.broadcast %cst_46 : f32 to vector<128x128xf32>
      %69 = arith.select %58, %67, %68 : vector<128x128xi1>, vector<128x128xf32>
      %cst_47 = arith.constant 1.000000e+00 : f32
      %cst_48 = arith.constant 5.000000e-03 : f32
      %70 = vector.broadcast %cst_47 : f32 to vector<128x128xf32>
      %71 = vector.broadcast %cst_48 : f32 to vector<128x128xf32>
      %72 = arith.select %58, %70, %71 : vector<128x128xi1>, vector<128x128xf32>
      %73 = arith.subf %66, %69 : vector<128x128xf32>
      %74 = arith.subf %66, %69 : vector<128x128xf32>
      %75 = arith.mulf %73, %74 : vector<128x128xf32>
      %76 = arith.mulf %75, %72 : vector<128x128xf32>
      %77 = vector.shape_cast %76 : vector<128x128xf32> to vector<1x128x128xf32>
      %cst_49 = arith.constant dense<0.000000e+00> : vector<1xf32>
      %78 = vector.multi_reduction <add>, %77, %cst_49 [1, 2] : vector<1x128x128xf32> to vector<1xf32>
      %79 = vector.shape_cast %78 : vector<1xf32> to vector<1x1x1xf32>
      %80 = vector.extract %79[0, 0, 0] : f32 from vector<1x1x1xf32>
      %81 = math.log %45 : vector<1x128xf32>
      %cst_50 = arith.constant 0.000000e+00 : f32
      %82 = vector.broadcast %cst_50 : f32 to vector<1x128xf32>
      %83 = arith.subf %82, %81 : vector<1x128xf32>
      %84 = arith.mulf %45, %45 : vector<1x128xf32>
      %85 = arith.mulf %34, %34 : vector<1x128xf32>
      %86 = arith.addf %84, %85 : vector<1x128xf32>
      %cst_51 = arith.constant 5.000000e-01 : f32
      %87 = vector.broadcast %cst_51 : f32 to vector<1x128xf32>
      %88 = arith.mulf %87, %86 : vector<1x128xf32>
      %89 = arith.addf %83, %88 : vector<1x128xf32>
      %cst_52 = arith.constant 5.000000e-01 : f32
      %90 = vector.broadcast %cst_52 : f32 to vector<1x128xf32>
      %91 = arith.subf %89, %90 : vector<1x128xf32>
      %92 = vector.shape_cast %91 : vector<1x128xf32> to vector<1x1x128xf32>
      %cst_53 = arith.constant dense<0.000000e+00> : vector<1xf32>
      %93 = vector.multi_reduction <add>, %92, %cst_53 [1, 2] : vector<1x1x128xf32> to vector<1xf32>
      %94 = vector.shape_cast %93 : vector<1xf32> to vector<1x1x1xf32>
      %95 = vector.extract %94[0, 0, 0] : f32 from vector<1x1x1xf32>
      %cst_54 = arith.constant 1.280000e+02 : f32
      %96 = arith.divf %95, %cst_54 : f32
      %cst_55 = arith.constant 1.000000e-01 : f32
      %97 = arith.mulf %cst_55, %96 : f32
      %98 = arith.addf %80, %97 : f32
      %99 = vector.broadcast %98 : f32 to vector<1x1xf32>
      %c0_56 = arith.constant 0 : index
      %c0_57 = arith.constant 0 : index
      %100 = vector.load %arg3[%c0_56, %c0_57] : memref<1x1xf32, #tpu.memory_space<vmem>>, vector<1x1xf32>
      tpu.vector_store %arg3[%c0_56, %c0_57], %99 {strides = array<i32>} : memref<1x1xf32, #tpu.memory_space<vmem>>, vector<1x1xf32>,
    } else {
    }
    return
  }
  func.func @transform_0(%arg0: i32) -> (i32, i32) {
    %c0_i32 = arith.constant 0 : i32
    %c0_i32_0 = arith.constant 0 : i32
    return %arg0, %c0_i32 : i32, i32
  }
  func.func @transform_1(%arg0: i32) -> (i32, i32) {
    %c0_i32 = arith.constant 0 : i32
    %c0_i32_0 = arith.constant 0 : i32
    return %arg0, %c0_i32 : i32, i32
  }
  func.func @transform_2(%arg0: i32) -> (i32, i32) {
    %c0_i32 = arith.constant 0 : i32
    %c0_i32_0 = arith.constant 0 : i32
    %c0_i32_1 = arith.constant 0 : i32
    return %c0_i32, %c0_i32_0 : i32, i32
  }
}

</mosaic_0001>

<llo_original>
// kernel: barlow_twins_loss.1
$region0: #{barlow_twins_loss.1}
  #allocation0 [shape = 'u32[]', space=smem, size = 0x4, offset = 0x4, fixed_abs, tag = 'smem constant byte address 0x4 - core index']
  #allocation1 [shape = 'u32[72,128]{1,0:T(1,128)}', space=vmem, size = 0x9000, scoped, tag = 'internal scratch']
  #allocation2 [shape = 'f32[128,128]{1,0:T(8,128)}', space=vmem, size = 0x10000, scoped, tag = 'scratch operand']
  #allocation3 [shape = 'f32[1,128]{1,0:T(1,128)}', space=vmem, size = 0x200, scoped, tag = 'scratch operand']
  #allocation4 [shape = 'f32[1,128]{1,0:T(1,128)}', space=vmem, size = 0x200, scoped, tag = 'scratch operand']
  #allocation5 [shape = 'f32[1,128]{1,0:T(1,128)}', space=vmem, size = 0x200, scoped, tag = 'scratch operand']
  %s0 = inlined_call_operand.vmem [shape: f32[256,128], index: 0, kind: input, shape index: {}]
  %s1 = inlined_call_operand.vmem [shape: f32[256,128], index: 1, kind: input, shape index: {}]
  %s2 = inlined_call_operand.hbm [shape: f32[1,1], index: 2, kind: output, shape index: {}]
  %s3 = sld [smem:[#allocation0]]
  $region49: #{barlow_twins_loss.1} parent=0
    _
  %s5 = ssub.s32 1, %s3
  %s6 = scalar_select 0, %s5, %s3
  $region1: #{barlow_twins_loss.1} parent=0
    #allocation6 [shape = 'u8[512]{0}', space=vmem, size = 0x400, scoped, tag = 'output window, operand 0, single buffered']
    #allocation7 [shape = 's32[2]{0}', space=sflag, size = 0x8, scoped, tag = 'scoped memory for barlow_twins_loss.1']
    %7 = vsyncpa [#allocation7], 0
    loop: start=0, step=1, limit=6
    $region2: #{barlow_twins_loss.1} parent=1 // loop_pre_header
      _
    $region3: #{barlow_twins_loss.1} parent=1 // loop_header
      %s9 = sphi 0, %s13
      %p10 = scmp.ge.s32.totalorder %s9, 6
      %s19 = sphi 0, %s21
      %s22 = sphi 0, %s19
      %s23 = sphi 0, %s22
      %s39 = sphi 0, %s23
      %s45 = sphi 0, %s47
      %s48 = sphi 0, %s45
      %s49 = sphi 0, %s48
      %s65 = sphi 0, %s49
      %s69 = sphi 0, %s69
      %s71 = sphi 0, %s69
      %s72 = sphi 0, %s71
      %s86 = sphi 0, %s72
    $region4: #{barlow_twins_loss.1} parent=1 // loop_header_branch
      %12 = sbr.rel (%p10) target = $region8
    $region5: #{barlow_twins_loss.1} parent=1 // loop_body
      %s14 = ssub.s32 %s9, 1
      %s15 = ssub.s32 %s9, 2
      %s16 = sadd.s32 %s9, 1
      %s17 = ssub.s32 %s9, %s16
      %p18 = scmp.eq.s32.totalorder %s17, 0
      %s20 = sadd.s32 %s19, 1
      %s21 = scalar_select %p18, %s19, %s20
      %p24 = pneg %p18
      %p25 = scmp.eq.s32.totalorder %s9, 3
      %p26 = por %p24, %p25
      %p27 = scmp.ne.s32.totalorder %s19, %s22
      %p28 = scmp.eq.s32.totalorder %s9, 0
      %p29 = por %p27, %p28
      %p30 = scmp.ne.s32.totalorder %s19, %s22
      %p31 = scmp.eq.s32.totalorder %s14, 3
      %p32 = por %p30, %p31
      %p33 = scmp.ne.s32.totalorder %s22, %s23
      %p34 = scmp.eq.s32.totalorder %s14, 0
      %p35 = por %p33, %p34
      %p36 = scmp.ne.s32.totalorder %s22, %s23
      %p37 = scmp.eq.s32.totalorder %s15, 3
      %p38 = por %p36, %p37
      %p40 = scmp.ne.s32.totalorder %s23, %s39
      %p41 = scmp.eq.s32.totalorder %s15, 0
      %p42 = por %p40, %p41
      %s43 = ssub.s32 %s9, %s16
      %p44 = scmp.eq.s32.totalorder %s43, 0
      %s46 = sadd.s32 %s45, 1
      %s47 = scalar_select %p44, %s45, %s46
      %p50 = pneg %p44
      %p51 = scmp.eq.s32.totalorder %s9, 3
      %p52 = por %p50, %p51
      %p53 = scmp.ne.s32.totalorder %s45, %s48
      %p54 = scmp.eq.s32.totalorder %s9, 0
      %p55 = por %p53, %p54
      %p56 = scmp.ne.s32.totalorder %s45, %s48
      %p57 = scmp.eq.s32.totalorder %s14, 3
      %p58 = por %p56, %p57
      %p59 = scmp.ne.s32.totalorder %s48, %s49
      %p60 = scmp.eq.s32.totalorder %s14, 0
      %p61 = por %p59, %p60
      %p62 = scmp.ne.s32.totalorder %s48, %s49
      %p63 = scmp.eq.s32.totalorder %s15, 3
      %p64 = por %p62, %p63
      %p66 = scmp.ne.s32.totalorder %s49, %s65
      %p67 = scmp.eq.s32.totalorder %s15, 0
      %p68 = por %p66, %p67
      %s70 = sadd.s32 %s69, 1
      %p73 = scmp.eq.s32.totalorder %s9, 3
      %p74 = scmp.ne.s32.totalorder %s69, %s71
      %p75 = scmp.eq.s32.totalorder %s9, 0
      %p76 = por %p74, %p75
      %p77 = scmp.ne.s32.totalorder %s69, %s71
      %p78 = scmp.eq.s32.totalorder %s14, 3
      %p79 = por %p77, %p78
      %p80 = scmp.ne.s32.totalorder %s71, %s72
      %p81 = scmp.eq.s32.totalorder %s14, 0
      %p82 = por %p80, %p81
      %p83 = scmp.ne.s32.totalorder %s71, %s72
      %p84 = scmp.eq.s32.totalorder %s15, 3
      %p85 = por %p83, %p84
      %p87 = scmp.ne.s32.totalorder %s72, %s86
      %p88 = scmp.eq.s32.totalorder %s15, 0
      %p89 = por %p87, %p88
      %p90 = scmp.le.s32.totalorder 1, %s9
      %p91 = scmp.lt.s32.totalorder %s9, 5
      %p92 = pnand %p90, %p91
      %p93 = pneg %p92
      // Predicated region
      $region9: #{barlow_twins_loss.1} parent=5 // pred_check
        _
      $region10: #{barlow_twins_loss.1} parent=5 // pred_check_branch
        %95 = sbr.rel (%p92) target = $region12
      $region11: #{barlow_twins_loss.1} parent=5 // pred_region
        %s96 = ssub.s32 %s9, 1
      $region12: #{barlow_twins_loss.1} parent=5 // pred_fallthru
        _
      %p97 = scmp.lt.s32.totalorder %s9, 4
      // Predicated region
      $region13: #{barlow_twins_loss.1} parent=5 // pred_check
        %p98 = pneg %p97
      $region14: #{barlow_twins_loss.1} parent=5 // pred_check_branch
        %100 = sbr.rel (%p98) target = $region16
      $region15: #{barlow_twins_loss.1} parent=5 // pred_region
        // Predicated region
        $region17: #{barlow_twins_loss.1} parent=15 // pred_check
          %p101 = pneg %p29
        $region18: #{barlow_twins_loss.1} parent=15 // pred_check_branch
          %103 = sbr.rel (%p101) target = $region20
        $region19: #{barlow_twins_loss.1} parent=15 // pred_region
          %s104 = smul.u32 8, %s9
          %p105 = scmp.lt.s32.totalorder %s104, 31
          %s106 = scalar_select %p105, %s104, 31
          %s107 = smul.addr %s106, 8
          %s108 = scalar_lea.vmem %s0, %s107
          %s109 = smul.u32 8, %s9
        $region20: #{barlow_twins_loss.1} parent=15 // pred_fallthru
          _
        // Predicated region
        $region21: #{barlow_twins_loss.1} parent=15 // pred_check
          %p110 = pneg %p55
        $region22: #{barlow_twins_loss.1} parent=15 // pred_check_branch
          %112 = sbr.rel (%p110) target = $region24
        $region23: #{barlow_twins_loss.1} parent=15 // pred_region
          %s113 = smul.u32 8, %s9
          %p114 = scmp.lt.s32.totalorder %s113, 31
          %s115 = scalar_select %p114, %s113, 31
          %s116 = smul.addr %s115, 8
          %s117 = scalar_lea.vmem %s1, %s116
          %s118 = smul.u32 8, %s9
        $region24: #{barlow_twins_loss.1} parent=15 // pred_fallthru
          _
      $region16: #{barlow_twins_loss.1} parent=5 // pred_fallthru
        _
      %p119 = scmp.le.s32.totalorder 1, %s9
      %p120 = scmp.lt.s32.totalorder %s9, 5
      %p121 = pnand %p119, %p120
      %p122 = pneg %p121
      // Predicated region
      $region25: #{barlow_twins_loss.1} parent=5 // pred_check
        _
      $region26: #{barlow_twins_loss.1} parent=5 // pred_check_branch
        %124 = sbr.rel (%p121) target = $region28
      $region27: #{barlow_twins_loss.1} parent=5 // pred_region
        %s125 = ssub.s32 %s9, 1
        %s126 = smul.u32 8, %s14
        %p127 = scmp.lt.s32.totalorder %s126, 31
        %s128 = scalar_select %p127, %s126, 31
        %s129 = smul.addr %s128, 8
        %s130 = scalar_lea.vmem %s0, %s129
        %p131 = pneg %p35
        %p132 = pneg %p32
        %s133 = smul.u32 8, %s14
        %p134 = scmp.lt.s32.totalorder %s133, 31
        %s135 = scalar_select %p134, %s133, 31
        %s136 = smul.addr %s135, 8
        %s137 = scalar_lea.vmem %s1, %s136
        %p138 = pneg %p61
        %p139 = pneg %p58
        %p140 = pneg %p82
        %p141 = pneg %p79
        %s142 = smul.u32 8, %s14
        %p143 = scmp.lt.s32.totalorder %s142, 31
        %s144 = scalar_select %p143, %s142, 31
        %s145 = smul.addr %s144, 8
        %s146 = scalar_lea.vmem %s0, %s145
        %s147 = smul.u32 8, %s14
        %s148 = smul.u32 8, %s14
        %p149 = scmp.lt.s32.totalorder %s148, 31
        %s150 = scalar_select %p149, %s148, 31
        %s151 = smul.addr %s150, 8
        %s152 = scalar_lea.vmem %s1, %s151
        %s153 = smul.u32 8, %s14
        %p154 = scmp.eq.s32.totalorder %s14, 0
        // Predicated region
        $region29: #{barlow_twins_loss.1} parent=27 // pred_check
          %p155 = pneg %p154
        $region30: #{barlow_twins_loss.1} parent=27 // pred_check_branch
          %157 = sbr.rel (%p155) target = $region32
        $region31: #{barlow_twins_loss.1} parent=27 // pred_region
          %158 = vst [vmem:[#allocation2] sm:$0xff] 0.0
          %159 = vst [vmem:[#allocation2 + $0x8] sm:$0xff] 0.0
          %160 = vst [vmem:[#allocation2 + $0x10] sm:$0xff] 0.0
          %161 = vst [vmem:[#allocation2 + $0x18] sm:$0xff] 0.0
          %162 = vst [vmem:[#allocation2 + $0x20] sm:$0xff] 0.0
          %163 = vst [vmem:[#allocation2 + $0x28] sm:$0xff] 0.0
          %164 = vst [vmem:[#allocation2 + $0x30] sm:$0xff] 0.0
          %165 = vst [vmem:[#allocation2 + $0x38] sm:$0xff] 0.0
          %166 = vst [vmem:[#allocation2 + $0x40] sm:$0xff] 0.0
          %167 = vst [vmem:[#allocation2 + $0x48] sm:$0xff] 0.0
          %168 = vst [vmem:[#allocation2 + $0x50] sm:$0xff] 0.0
          %169 = vst [vmem:[#allocation2 + $0x58] sm:$0xff] 0.0
          %170 = vst [vmem:[#allocation2 + $0x60] sm:$0xff] 0.0
          %171 = vst [vmem:[#allocation2 + $0x68] sm:$0xff] 0.0
          %172 = vst [vmem:[#allocation2 + $0x70] sm:$0xff] 0.0
          %173 = vst [vmem:[#allocation2 + $0x78] sm:$0xff] 0.0
          %174 = vst [vmem:[#allocation3] sm:$0x1] 0.0
          %175 = vst [vmem:[#allocation4] sm:$0x1] 0.0
          %176 = vst [vmem:[#allocation5] sm:$0x1] 0.0
        $region32: #{barlow_twins_loss.1} parent=27 // pred_fallthru
          _
        %v177 = vld [vmem:[%s146] sm:$0xff]
        %v178 = vld [vmem:[%s146 + $0x8] sm:$0xff]
        %v179 = vld [vmem:[%s146 + $0x10] sm:$0xff]
        %v180 = vld [vmem:[%s146 + $0x18] sm:$0xff]
        %v181 = vld [vmem:[%s146 + $0x20] sm:$0xff]
        %v182 = vld [vmem:[%s146 + $0x28] sm:$0xff]
        %v183 = vld [vmem:[%s146 + $0x30] sm:$0xff]
        %v184 = vld [vmem:[%s146 + $0x38] sm:$0xff]
        %v185 = vld [vmem:[%s152] sm:$0xff]
        %v186 = vld [vmem:[%s152 + $0x8] sm:$0xff]
        %v187 = vld [vmem:[%s152 + $0x10] sm:$0xff]
        %v188 = vld [vmem:[%s152 + $0x18] sm:$0xff]
        %v189 = vld [vmem:[%s152 + $0x20] sm:$0xff]
        %v190 = vld [vmem:[%s152 + $0x28] sm:$0xff]
        %v191 = vld [vmem:[%s152 + $0x30] sm:$0xff]
        %v192 = vld [vmem:[%s152 + $0x38] sm:$0xff]
        %v193 = vld [vmem:[#allocation2] sm:$0xff]
        %v194 = vld [vmem:[#allocation2 + $0x8] sm:$0xff]
        %v195 = vld [vmem:[#allocation2 + $0x10] sm:$0xff]
        %v196 = vld [vmem:[#allocation2 + $0x18] sm:$0xff]
        %v197 = vld [vmem:[#allocation2 + $0x20] sm:$0xff]
        %v198 = vld [vmem:[#allocation2 + $0x28] sm:$0xff]
        %v199 = vld [vmem:[#allocation2 + $0x30] sm:$0xff]
        %v200 = vld [vmem:[#allocation2 + $0x38] sm:$0xff]
        %v201 = vld [vmem:[#allocation2 + $0x40] sm:$0xff]
        %v202 = vld [vmem:[#allocation2 + $0x48] sm:$0xff]
        %v203 = vld [vmem:[#allocation2 + $0x50] sm:$0xff]
        %v204 = vld [vmem:[#allocation2 + $0x58] sm:$0xff]
        %v205 = vld [vmem:[#allocation2 + $0x60] sm:$0xff]
        %v206 = vld [vmem:[#allocation2 + $0x68] sm:$0xff]
        %v207 = vld [vmem:[#allocation2 + $0x70] sm:$0xff]
        %v208 = vld [vmem:[#allocation2 + $0x78] sm:$0xff]
        %209 = vxpose.xlu0.b32.start [1/16] %v177, 128
        %210 = vxpose.xlu0.b32.cont [2/16] %v178, 128
        %211 = vxpose.xlu0.b32.cont [3/16] %v179, 128
        %212 = vxpose.xlu0.b32.cont [4/16] %v180, 128
        %213 = vxpose.xlu0.b32.cont [5/16] %v181, 128
        %214 = vxpose.xlu0.b32.cont [6/16] %v182, 128
        %215 = vxpose.xlu0.b32.cont [7/16] %v183, 128
        %216 = vxpose.xlu0.b32.cont [8/16] %v184, 128
        %217 = vxpose.xlu0.b32.cont [9/16] 0.0, 128
        %218 = vxpose.xlu0.b32.cont [10/16] 0.0, 128
        %219 = vxpose.xlu0.b32.cont [11/16] 0.0, 128
        %220 = vxpose.xlu0.b32.cont [12/16] 0.0, 128
        %221 = vxpose.xlu0.b32.cont [13/16] 0.0, 128
        %222 = vxpose.xlu0.b32.cont [14/16] 0.0, 128
        %223 = vxpose.xlu0.b32.cont [15/16] 0.0, 128
        %224 = vxpose.xlu0.b32.end [16/16] 0.0, 128
        %v225 = vpop.trf.xlu0
        %v226 = vpop.trf.xlu0
        %v227 = vpop.trf.xlu0
        %v228 = vpop.trf.xlu0
        %v229 = vpop.trf.xlu0
        %v230 = vpop.trf.xlu0
        %v231 = vpop.trf.xlu0
        %v232 = vpop.trf.xlu0
        %v233 = vpop.trf.xlu0
        %v234 = vpop.trf.xlu0
        %v235 = vpop.trf.xlu0
        %v236 = vpop.trf.xlu0
        %v237 = vpop.trf.xlu0
        %v238 = vpop.trf.xlu0
        %v239 = vpop.trf.xlu0
        %v240 = vpop.trf.xlu0
        %vm241 = vcmask 523264
        %v243 = vsel %vm241, %v225, 0
        %v246 = vsel %vm241, %v226, 0
        %v249 = vsel %vm241, %v227, 0
        %v252 = vsel %vm241, %v228, 0
        %v255 = vsel %vm241, %v229, 0
        %v258 = vsel %vm241, %v230, 0
        %v261 = vsel %vm241, %v231, 0
        %v264 = vsel %vm241, %v232, 0
        %v267 = vsel %vm241, %v233, 0
        %v270 = vsel %vm241, %v234, 0
        %v273 = vsel %vm241, %v235, 0
        %v276 = vsel %vm241, %v236, 0
        %v279 = vsel %vm241, %v237, 0
        %v282 = vsel %vm241, %v238, 0
        %v285 = vsel %vm241, %v239, 0
        %v288 = vsel %vm241, %v240, 0
        %290 = vmatpush.msra.mxu0 0.0
        %291 = vmatpush.msra.mxu0 0.0
        %292 = vmatpush.msra.mxu0 0.0
        %293 = vmatpush.msra.mxu0 0.0
        %294 = vmatpush.msra.mxu0 0.0
        %295 = vmatpush.msra.mxu0 0.0
        %296 = vmatpush.msra.mxu0 0.0
        %297 = vmatpush.msra.mxu0 0.0
        %298 = vmatpush.msra.mxu0 %v192
        %299 = vmatpush.msra.mxu0 %v191
        %300 = vmatpush.msra.mxu0 %v190
        %301 = vmatpush.msra.mxu0 %v189
        %302 = vmatpush.msra.mxu0 %v188
        %303 = vmatpush.msra.mxu0 %v187
        %304 = vmatpush.msra.mxu0 %v186
        %305 = vmatpush.msra.mxu0 %v185
        %306 = vmatmul.f32.gmra.mxu0 %v243
        %v307 = vpop.f32.mrf.mxu0
        %v308 = vadd.f32 0.0, %v307
        %309 = vmatmul.f32.gmra.mxu0 %v246
        %v310 = vpop.f32.mrf.mxu0
        %v311 = vadd.f32 0.0, %v310
        %312 = vmatmul.f32.gmra.mxu0 %v249
        %v313 = vpop.f32.mrf.mxu0
        %v314 = vadd.f32 0.0, %v313
        %315 = vmatmul.f32.gmra.mxu0 %v252
        %v316 = vpop.f32.mrf.mxu0
        %v317 = vadd.f32 0.0, %v316
        %318 = vmatmul.f32.gmra.mxu0 %v255
        %v319 = vpop.f32.mrf.mxu0
        %v320 = vadd.f32 0.0, %v319
        %321 = vmatmul.f32.gmra.mxu0 %v258
        %v322 = vpop.f32.mrf.mxu0
        %v323 = vadd.f32 0.0, %v322
        %324 = vmatmul.f32.gmra.mxu0 %v261
        %v325 = vpop.f32.mrf.mxu0
        %v326 = vadd.f32 0.0, %v325
        %327 = vmatmul.f32.gmra.mxu0 %v264
        %v328 = vpop.f32.mrf.mxu0
        %v329 = vadd.f32 0.0, %v328
        %330 = vmatmul.f32.gmra.mxu0 %v267
        %v331 = vpop.f32.mrf.mxu0
        %v332 = vadd.f32 0.0, %v331
        %333 = vmatmul.f32.gmra.mxu0 %v270
        %v334 = vpop.f32.mrf.mxu0
        %v335 = vadd.f32 0.0, %v334
        %336 = vmatmul.f32.gmra.mxu0 %v273
        %v337 = vpop.f32.mrf.mxu0
        %v338 = vadd.f32 0.0, %v337
        %339 = vmatmul.f32.gmra.mxu0 %v276
        %v340 = vpop.f32.mrf.mxu0
        %v341 = vadd.f32 0.0, %v340
        %342 = vmatmul.f32.gmra.mxu0 %v279
        %v343 = vpop.f32.mrf.mxu0
        %v344 = vadd.f32 0.0, %v343
        %345 = vmatmul.f32.gmra.mxu0 %v282
        %v346 = vpop.f32.mrf.mxu0
        %v347 = vadd.f32 0.0, %v346
        %348 = vmatmul.f32.gmra.mxu0 %v285
        %v349 = vpop.f32.mrf.mxu0
        %v350 = vadd.f32 0.0, %v349
        %351 = vmatmul.f32.gmra.mxu0 %v288
        %v352 = vpop.f32.mrf.mxu0
        %v353 = vadd.f32 0.0, %v352
        %354 = vdwg.mxu0
        %v355 = vadd.f32 %v193, %v308
        %v356 = vadd.f32 %v194, %v311
        %v357 = vadd.f32 %v195, %v314
        %v358 = vadd.f32 %v196, %v317
        %v359 = vadd.f32 %v197, %v320
        %v360 = vadd.f32 %v198, %v323
        %v361 = vadd.f32 %v199, %v326
        %v362 = vadd.f32 %v200, %v329
        %v363 = vadd.f32 %v201, %v332
        %v364 = vadd.f32 %v202, %v335
        %v365 = vadd.f32 %v203, %v338
        %v366 = vadd.f32 %v204, %v341
        %v367 = vadd.f32 %v205, %v344
        %v368 = vadd.f32 %v206, %v347
        %v369 = vadd.f32 %v207, %v350
        %v370 = vadd.f32 %v208, %v353
        %371 = vst [vmem:[#allocation2] sm:$0xff] %v355
        %372 = vst [vmem:[#allocation2 + $0x8] sm:$0xff] %v356
        %373 = vst [vmem:[#allocation2 + $0x10] sm:$0xff] %v357
        %374 = vst [vmem:[#allocation2 + $0x18] sm:$0xff] %v358
        %375 = vst [vmem:[#allocation2 + $0x20] sm:$0xff] %v359
        %376 = vst [vmem:[#allocation2 + $0x28] sm:$0xff] %v360
        %377 = vst [vmem:[#allocation2 + $0x30] sm:$0xff] %v361
        %378 = vst [vmem:[#allocation2 + $0x38] sm:$0xff] %v362
        %379 = vst [vmem:[#allocation2 + $0x40] sm:$0xff] %v363
        %380 = vst [vmem:[#allocation2 + $0x48] sm:$0xff] %v364
        %381 = vst [vmem:[#allocation2 + $0x50] sm:$0xff] %v365
        %382 = vst [vmem:[#allocation2 + $0x58] sm:$0xff] %v366
        %383 = vst [vmem:[#allocation2 + $0x60] sm:$0xff] %v367
        %384 = vst [vmem:[#allocation2 + $0x68] sm:$0xff] %v368
        %385 = vst [vmem:[#allocation2 + $0x70] sm:$0xff] %v369
        %386 = vst [vmem:[#allocation2 + $0x78] sm:$0xff] %v370
        %v387 = vld [vmem:[#allocation3] sm:$0x1]
        %v388 = vadd.f32 %v177, %v178
        %v389 = vadd.f32 %v388, %v179
        %v390 = vadd.f32 %v389, %v180
        %v391 = vadd.f32 %v390, %v181
        %v392 = vadd.f32 %v391, %v182
        %v393 = vadd.f32 %v392, %v183
        %v394 = vadd.f32 %v393, %v184
        %v395 = vrot.slane %v394, 4
        %v396 = vadd.f32 %v394, %v395
        %v397 = vrot.slane %v396, 2
        %v398 = vadd.f32 %v396, %v397
        %v399 = vrot.slane %v398, 1
        %v400 = vadd.f32 %v398, %v399
        %v401 = vadd.f32 %v387, %v400
        %402 = vst [vmem:[#allocation3] sm:$0x1] %v401
        %v403 = vld [vmem:[#allocation4] sm:$0x1]
        %v404 = vadd.f32 %v185, %v186
        %v405 = vadd.f32 %v404, %v187
        %v406 = vadd.f32 %v405, %v188
        %v407 = vadd.f32 %v406, %v189
        %v408 = vadd.f32 %v407, %v190
        %v409 = vadd.f32 %v408, %v191
        %v410 = vadd.f32 %v409, %v192
        %v411 = vrot.slane %v410, 4
        %v412 = vadd.f32 %v410, %v411
        %v413 = vrot.slane %v412, 2
        %v414 = vadd.f32 %v412, %v413
        %v415 = vrot.slane %v414, 1
        %v416 = vadd.f32 %v414, %v415
        %v417 = vadd.f32 %v403, %v416
        %418 = vst [vmem:[#allocation4] sm:$0x1] %v417
        %v419 = vld [vmem:[#allocation5] sm:$0x1]
        %v420 = vmul.f32 %v177, %v177
        %v421 = vmul.f32 %v178, %v178
        %v422 = vmul.f32 %v179, %v179
        %v423 = vmul.f32 %v180, %v180
        %v424 = vmul.f32 %v181, %v181
        %v425 = vmul.f32 %v182, %v182
        %v426 = vmul.f32 %v183, %v183
        %v427 = vmul.f32 %v184, %v184
        %v428 = vmul.f32 %v185, %v185
        %v429 = vmul.f32 %v186, %v186
        %v430 = vmul.f32 %v187, %v187
        %v431 = vmul.f32 %v188, %v188
        %v432 = vmul.f32 %v189, %v189
        %v433 = vmul.f32 %v190, %v190
        %v434 = vmul.f32 %v191, %v191
        %v435 = vmul.f32 %v192, %v192
        %v436 = vadd.f32 %v420, %v428
        %v437 = vadd.f32 %v421, %v429
        %v438 = vadd.f32 %v422, %v430
        %v439 = vadd.f32 %v423, %v431
        %v440 = vadd.f32 %v424, %v432
        %v441 = vadd.f32 %v425, %v433
        %v442 = vadd.f32 %v426, %v434
        %v443 = vadd.f32 %v427, %v435
        %v444 = vadd.f32 %v436, %v437
        %v445 = vadd.f32 %v444, %v438
        %v446 = vadd.f32 %v445, %v439
        %v447 = vadd.f32 %v446, %v440
        %v448 = vadd.f32 %v447, %v441
        %v449 = vadd.f32 %v448, %v442
        %v450 = vadd.f32 %v449, %v443
        %v451 = vrot.slane %v450, 4
        %v452 = vadd.f32 %v450, %v451
        %v453 = vrot.slane %v452, 2
        %v454 = vadd.f32 %v452, %v453
        %v455 = vrot.slane %v454, 1
        %v456 = vadd.f32 %v454, %v455
        %v457 = vadd.f32 %v419, %v456
        %458 = vst [vmem:[#allocation5] sm:$0x1] %v457
        %p459 = scmp.eq.s32.totalorder %s14, 3
        // Predicated region
        $region33: #{barlow_twins_loss.1} parent=27 // pred_check
          %p460 = pneg %p459
        $region34: #{barlow_twins_loss.1} parent=27 // pred_check_branch
          %462 = sbr.rel (%p460) target = $region36
        $region35: #{barlow_twins_loss.1} parent=27 // pred_region
          %v463 = vld [vmem:[#allocation3] sm:$0x1]
          %v464 = vld [vmem:[#allocation4] sm:$0x1]
          %v465 = vadd.f32 %v463, %v464
          %v466 = vrcp.pop 400.0
          %v467 = vmul.f32 400.0, %v466
          %v468 = vsub.f32 1.0, %v467
          %v469 = vmul.f32 %v466, %v468
          %v470 = vadd.f32 %v466, %v469
          %vm471 = vweird.f32 %v466
          %v472 = vsel %vm471, %v466, %v470
          %v473 = vmul.f32 %v465, %v472
          %v474 = vld [vmem:[#allocation5] sm:$0x1]
          %v475 = vmul.f32 %v473, 400.0
          %v476 = vmul.f32 %v475, %v473
          %v477 = vsub.f32 %v474, %v476
          %v478 = vrcp.pop 399.0
          %v479 = vmul.f32 399.0, %v478
          %v480 = vsub.f32 1.0, %v479
          %v481 = vmul.f32 %v478, %v480
          %v482 = vadd.f32 %v478, %v481
          %vm483 = vweird.f32 %v478
          %v484 = vsel %vm483, %v478, %v482
          %v485 = vmul.f32 %v477, %v484
          %v486 = vmax.f32 %v485, 0.0
          %v487 = vrsqrt.pop %v486
          %v488 = vmul.f32 %v487, %v486
          %v489 = vmul.f32 %v488, %v487
          %v490 = vmul.f32 0.5, %v489
          %v491 = vsub.f32 1.5, %v490
          %v492 = vmul.f32 %v487, %v491
          %v493 = vmul.f32 %v486, %v492
          %vm494 = vcmp.eq.f32.partialorder %v486, inf
          %v495 = vsel %vm494, %v486, %v493
          %vm496 = vcmp.eq.f32.partialorder %v486, 0.0
          %v497 = vand.u32 %v486, 2147483648
          %v498 = vsel %vm496, %v497, %v495
          %v499 = vrcp.pop %v498
          %v500 = vmul.f32 %v498, %v499
          %v501 = vsub.f32 1.0, %v500
          %v502 = vmul.f32 %v499, %v501
          %v503 = vadd.f32 %v499, %v502
          %vm504 = vweird.f32 %v498
          %vm505 = vweird.f32 %v499
          %vm506 = vmor %vm504, %vm505
          %v507 = vsel %vm506, %v499, %v503
          %v508 = vand.u32 2147483647, %v498
          %vm509 = vcmp.eq.f32.partialorder %v508, 8.507059e+37
          %v510 = vand.u32 %v498, 2147483648
          %v511 = vor.u32 1.1754944e-38, %v510
          %v512 = vsel %vm509, %v511, %v507
          %v513 = vmul.f32 1.0, %v512
          %v514 = vld [vmem:[#allocation2] sm:$0xff]
          %v515 = vld [vmem:[#allocation2 + $0x8] sm:$0xff]
          %v516 = vld [vmem:[#allocation2 + $0x10] sm:$0xff]
          %v517 = vld [vmem:[#allocation2 + $0x18] sm:$0xff]
          %v518 = vld [vmem:[#allocation2 + $0x20] sm:$0xff]
          %v519 = vld [vmem:[#allocation2 + $0x28] sm:$0xff]
          %v520 = vld [vmem:[#allocation2 + $0x30] sm:$0xff]
          %v521 = vld [vmem:[#allocation2 + $0x38] sm:$0xff]
          %v522 = vld [vmem:[#allocation2 + $0x40] sm:$0xff]
          %v523 = vld [vmem:[#allocation2 + $0x48] sm:$0xff]
          %v524 = vld [vmem:[#allocation2 + $0x50] sm:$0xff]
          %v525 = vld [vmem:[#allocation2 + $0x58] sm:$0xff]
          %v526 = vld [vmem:[#allocation2 + $0x60] sm:$0xff]
          %v527 = vld [vmem:[#allocation2 + $0x68] sm:$0xff]
          %v528 = vld [vmem:[#allocation2 + $0x70] sm:$0xff]
          %v529 = vld [vmem:[#allocation2 + $0x78] sm:$0xff]
          %530 = vxpose.xlu0.b32.start [1/16] %v463, 128
          %531 = vxpose.xlu0.b32.cont [2/16] 0.0, 128
          %532 = vxpose.xlu0.b32.cont [3/16] 0.0, 128
          %533 = vxpose.xlu0.b32.cont [4/16] 0.0, 128
          %534 = vxpose.xlu0.b32.cont [5/16] 0.0, 128
          %535 = vxpose.xlu0.b32.cont [6/16] 0.0, 128
          %536 = vxpose.xlu0.b32.cont [7/16] 0.0, 128
          %537 = vxpose.xlu0.b32.cont [8/16] 0.0, 128
          %538 = vxpose.xlu0.b32.cont [9/16] 0.0, 128
          %539 = vxpose.xlu0.b32.cont [10/16] 0.0, 128
          %540 = vxpose.xlu0.b32.cont [11/16] 0.0, 128
          %541 = vxpose.xlu0.b32.cont [12/16] 0.0, 128
          %542 = vxpose.xlu0.b32.cont [13/16] 0.0, 128
          %543 = vxpose.xlu0.b32.cont [14/16] 0.0, 128
          %544 = vxpose.xlu0.b32.cont [15/16] 0.0, 128
          %545 = vxpose.xlu0.b32.end [16/16] 0.0, 128
          %v546 = vpop.trf.xlu0
          %v547 = vpop.trf.xlu0
          %v548 = vpop.trf.xlu0
          %v549 = vpop.trf.xlu0
          %v550 = vpop.trf.xlu0
          %v551 = vpop.trf.xlu0
          %v552 = vpop.trf.xlu0
          %v553 = vpop.trf.xlu0
          %v554 = vpop.trf.xlu0
          %v555 = vpop.trf.xlu0
          %v556 = vpop.trf.xlu0
          %v557 = vpop.trf.xlu0
          %v558 = vpop.trf.xlu0
          %v559 = vpop.trf.xlu0
          %v560 = vpop.trf.xlu0
          %v561 = vpop.trf.xlu0
          %vm562 = vcmask 7168
          %v564 = vsel %vm562, %v546, 0
          %v567 = vsel %vm562, %v547, 0
          %v570 = vsel %vm562, %v548, 0
          %v573 = vsel %vm562, %v549, 0
          %v576 = vsel %vm562, %v550, 0
          %v579 = vsel %vm562, %v551, 0
          %v582 = vsel %vm562, %v552, 0
          %v585 = vsel %vm562, %v553, 0
          %v588 = vsel %vm562, %v554, 0
          %v591 = vsel %vm562, %v555, 0
          %v594 = vsel %vm562, %v556, 0
          %v597 = vsel %vm562, %v557, 0
          %v600 = vsel %vm562, %v558, 0
          %v603 = vsel %vm562, %v559, 0
          %v606 = vsel %vm562, %v560, 0
          %v609 = vsel %vm562, %v561, 0
          %vm611 = vcmask 1040384
          %v613 = vsel %vm611, %v473, 0
          %615 = vmatpush.msra.mxu0 0.0
          %616 = vmatpush.msra.mxu0 0.0
          %617 = vmatpush.msra.mxu0 0.0
          %618 = vmatpush.msra.mxu0 0.0
          %619 = vmatpush.msra.mxu0 0.0
          %620 = vmatpush.msra.mxu0 0.0
          %621 = vmatpush.msra.mxu0 0.0
          %622 = vmatpush.msra.mxu0 0.0
          %623 = vmatpush.msra.mxu0 0.0
          %624 = vmatpush.msra.mxu0 0.0
          %625 = vmatpush.msra.mxu0 0.0
          %626 = vmatpush.msra.mxu0 0.0
          %627 = vmatpush.msra.mxu0 0.0
          %628 = vmatpush.msra.mxu0 0.0
          %629 = vmatpush.msra.mxu0 0.0
          %630 = vmatpush.msra.mxu0 %v613
          %631 = vmatmul.f32.gmra.mxu0 %v564
          %v632 = vpop.f32.mrf.mxu0
          %v633 = vadd.f32 0.0, %v632
          %634 = vmatmul.f32.gmra.mxu0 %v567
          %v635 = vpop.f32.mrf.mxu0
          %v636 = vadd.f32 0.0, %v635
          %637 = vmatmul.f32.gmra.mxu0 %v570
          %v638 = vpop.f32.mrf.mxu0
          %v639 = vadd.f32 0.0, %v638
          %640 = vmatmul.f32.gmra.mxu0 %v573
          %v641 = vpop.f32.mrf.mxu0
          %v642 = vadd.f32 0.0, %v641
          %643 = vmatmul.f32.gmra.mxu0 %v576
          %v644 = vpop.f32.mrf.mxu0
          %v645 = vadd.f32 0.0, %v644
          %646 = vmatmul.f32.gmra.mxu0 %v579
          %v647 = vpop.f32.mrf.mxu0
          %v648 = vadd.f32 0.0, %v647
          %649 = vmatmul.f32.gmra.mxu0 %v582
          %v650 = vpop.f32.mrf.mxu0
          %v651 = vadd.f32 0.0, %v650
          %652 = vmatmul.f32.gmra.mxu0 %v585
          %v653 = vpop.f32.mrf.mxu0
          %v654 = vadd.f32 0.0, %v653
          %655 = vmatmul.f32.gmra.mxu0 %v588
          %v656 = vpop.f32.mrf.mxu0
          %v657 = vadd.f32 0.0, %v656
          %658 = vmatmul.f32.gmra.mxu0 %v591
          %v659 = vpop.f32.mrf.mxu0
          %v660 = vadd.f32 0.0, %v659
          %661 = vmatmul.f32.gmra.mxu0 %v594
          %v662 = vpop.f32.mrf.mxu0
          %v663 = vadd.f32 0.0, %v662
          %664 = vmatmul.f32.gmra.mxu0 %v597
          %v665 = vpop.f32.mrf.mxu0
          %v666 = vadd.f32 0.0, %v665
          %667 = vmatmul.f32.gmra.mxu0 %v600
          %v668 = vpop.f32.mrf.mxu0
          %v669 = vadd.f32 0.0, %v668
          %670 = vmatmul.f32.gmra.mxu0 %v603
          %v671 = vpop.f32.mrf.mxu0
          %v672 = vadd.f32 0.0, %v671
          %673 = vmatmul.f32.gmra.mxu0 %v606
          %v674 = vpop.f32.mrf.mxu0
          %v675 = vadd.f32 0.0, %v674
          %676 = vmatmul.f32.gmra.mxu0 %v609
          %v677 = vpop.f32.mrf.mxu0
          %v678 = vadd.f32 0.0, %v677
          %679 = vdwg.mxu0
          %v680 = vsub.f32 %v514, %v633
          %v681 = vsub.f32 %v515, %v636
          %v682 = vsub.f32 %v516, %v639
          %v683 = vsub.f32 %v517, %v642
          %v684 = vsub.f32 %v518, %v645
          %v685 = vsub.f32 %v519, %v648
          %v686 = vsub.f32 %v520, %v651
          %v687 = vsub.f32 %v521, %v654
          %v688 = vsub.f32 %v522, %v657
          %v689 = vsub.f32 %v523, %v660
          %v690 = vsub.f32 %v524, %v663
          %v691 = vsub.f32 %v525, %v666
          %v692 = vsub.f32 %v526, %v669
          %v693 = vsub.f32 %v527, %v672
          %v694 = vsub.f32 %v528, %v675
          %v695 = vsub.f32 %v529, %v678
          %v696 = vmul.f32 %v473, 200.0
          %v697 = vsub.f32 %v696, %v464
          %698 = vxpose.xlu0.b32.start [1/16] %v473, 128
          %699 = vxpose.xlu0.b32.cont [2/16] 0.0, 128
          %700 = vxpose.xlu0.b32.cont [3/16] 0.0, 128
          %701 = vxpose.xlu0.b32.cont [4/16] 0.0, 128
          %702 = vxpose.xlu0.b32.cont [5/16] 0.0, 128
          %703 = vxpose.xlu0.b32.cont [6/16] 0.0, 128
          %704 = vxpose.xlu0.b32.cont [7/16] 0.0, 128
          %705 = vxpose.xlu0.b32.cont [8/16] 0.0, 128
          %706 = vxpose.xlu0.b32.cont [9/16] 0.0, 128
          %707 = vxpose.xlu0.b32.cont [10/16] 0.0, 128
          %708 = vxpose.xlu0.b32.cont [11/16] 0.0, 128
          %709 = vxpose.xlu0.b32.cont [12/16] 0.0, 128
          %710 = vxpose.xlu0.b32.cont [13/16] 0.0, 128
          %711 = vxpose.xlu0.b32.cont [14/16] 0.0, 128
          %712 = vxpose.xlu0.b32.cont [15/16] 0.0, 128
          %713 = vxpose.xlu0.b32.end [16/16] 0.0, 128
          %v714 = vpop.trf.xlu0
          %v715 = vpop.trf.xlu0
          %v716 = vpop.trf.xlu0
          %v717 = vpop.trf.xlu0
          %v718 = vpop.trf.xlu0
          %v719 = vpop.trf.xlu0
          %v720 = vpop.trf.xlu0
          %v721 = vpop.trf.xlu0
          %v722 = vpop.trf.xlu0
          %v723 = vpop.trf.xlu0
          %v724 = vpop.trf.xlu0
          %v725 = vpop.trf.xlu0
          %v726 = vpop.trf.xlu0
          %v727 = vpop.trf.xlu0
          %v728 = vpop.trf.xlu0
          %v729 = vpop.trf.xlu0
          %v731 = vsel %vm562, %v714, 0
          %v734 = vsel %vm562, %v715, 0
          %v737 = vsel %vm562, %v716, 0
          %v740 = vsel %vm562, %v717, 0
          %v743 = vsel %vm562, %v718, 0
          %v746 = vsel %vm562, %v719, 0
          %v749 = vsel %vm562, %v720, 0
          %v752 = vsel %vm562, %v721, 0
          %v755 = vsel %vm562, %v722, 0
          %v758 = vsel %vm562, %v723, 0
          %v761 = vsel %vm562, %v724, 0
          %v764 = vsel %vm562, %v725, 0
          %v767 = vsel %vm562, %v726, 0
          %v770 = vsel %vm562, %v727, 0
          %v773 = vsel %vm562, %v728, 0
          %v776 = vsel %vm562, %v729, 0
          %v779 = vsel %vm611, %v697, 0
          %781 = vmatpush.msra.mxu0 0.0
          %782 = vmatpush.msra.mxu0 0.0
          %783 = vmatpush.msra.mxu0 0.0
          %784 = vmatpush.msra.mxu0 0.0
          %785 = vmatpush.msra.mxu0 0.0
          %786 = vmatpush.msra.mxu0 0.0
          %787 = vmatpush.msra.mxu0 0.0
          %788 = vmatpush.msra.mxu0 0.0
          %789 = vmatpush.msra.mxu0 0.0
          %790 = vmatpush.msra.mxu0 0.0
          %791 = vmatpush.msra.mxu0 0.0
          %792 = vmatpush.msra.mxu0 0.0
          %793 = vmatpush.msra.mxu0 0.0
          %794 = vmatpush.msra.mxu0 0.0
          %795 = vmatpush.msra.mxu0 0.0
          %796 = vmatpush.msra.mxu0 %v779
          %797 = vmatmul.f32.gmra.mxu0 %v731
          %v798 = vpop.f32.mrf.mxu0
          %v799 = vadd.f32 0.0, %v798
          %800 = vmatmul.f32.gmra.mxu0 %v734
          %v801 = vpop.f32.mrf.mxu0
          %v802 = vadd.f32 0.0, %v801
          %803 = vmatmul.f32.gmra.mxu0 %v737
          %v804 = vpop.f32.mrf.mxu0
          %v805 = vadd.f32 0.0, %v804
          %806 = vmatmul.f32.gmra.mxu0 %v740
          %v807 = vpop.f32.mrf.mxu0
          %v808 = vadd.f32 0.0, %v807
          %809 = vmatmul.f32.gmra.mxu0 %v743
          %v810 = vpop.f32.mrf.mxu0
          %v811 = vadd.f32 0.0, %v810
          %812 = vmatmul.f32.gmra.mxu0 %v746
          %v813 = vpop.f32.mrf.mxu0
          %v814 = vadd.f32 0.0, %v813
          %815 = vmatmul.f32.gmra.mxu0 %v749
          %v816 = vpop.f32.mrf.mxu0
          %v817 = vadd.f32 0.0, %v816
          %818 = vmatmul.f32.gmra.mxu0 %v752
          %v819 = vpop.f32.mrf.mxu0
          %v820 = vadd.f32 0.0, %v819
          %821 = vmatmul.f32.gmra.mxu0 %v755
          %v822 = vpop.f32.mrf.mxu0
          %v823 = vadd.f32 0.0, %v822
          %824 = vmatmul.f32.gmra.mxu0 %v758
          %v825 = vpop.f32.mrf.mxu0
          %v826 = vadd.f32 0.0, %v825
          %827 = vmatmul.f32.gmra.mxu0 %v761
          %v828 = vpop.f32.mrf.mxu0
          %v829 = vadd.f32 0.0, %v828
          %830 = vmatmul.f32.gmra.mxu0 %v764
          %v831 = vpop.f32.mrf.mxu0
          %v832 = vadd.f32 0.0, %v831
          %833 = vmatmul.f32.gmra.mxu0 %v767
          %v834 = vpop.f32.mrf.mxu0
          %v835 = vadd.f32 0.0, %v834
          %836 = vmatmul.f32.gmra.mxu0 %v770
          %v837 = vpop.f32.mrf.mxu0
          %v838 = vadd.f32 0.0, %v837
          %839 = vmatmul.f32.gmra.mxu0 %v773
          %v840 = vpop.f32.mrf.mxu0
          %v841 = vadd.f32 0.0, %v840
          %842 = vmatmul.f32.gmra.mxu0 %v776
          %v843 = vpop.f32.mrf.mxu0
          %v844 = vadd.f32 0.0, %v843
          %845 = vdwg.mxu0
          %v846 = vadd.f32 %v680, %v799
          %v847 = vadd.f32 %v681, %v802
          %v848 = vadd.f32 %v682, %v805
          %v849 = vadd.f32 %v683, %v808
          %v850 = vadd.f32 %v684, %v811
          %v851 = vadd.f32 %v685, %v814
          %v852 = vadd.f32 %v686, %v817
          %v853 = vadd.f32 %v687, %v820
          %v854 = vadd.f32 %v688, %v823
          %v855 = vadd.f32 %v689, %v826
          %v856 = vadd.f32 %v690, %v829
          %v857 = vadd.f32 %v691, %v832
          %v858 = vadd.f32 %v692, %v835
          %v859 = vadd.f32 %v693, %v838
          %v860 = vadd.f32 %v694, %v841
          %v861 = vadd.f32 %v695, %v844
          %v862 = vlaneseq
          %v863 = vshrl.u32 %v862, 7
          %v864 = vadd.s32 %v863, 8
          %v865 = vadd.s32 %v863, 16
          %v866 = vadd.s32 %v863, 24
          %v867 = vadd.s32 %v863, 32
          %v868 = vadd.s32 %v863, 40
          %v869 = vadd.s32 %v863, 48
          %v870 = vadd.s32 %v863, 56
          %v871 = vadd.s32 %v863, 64
          %v872 = vadd.s32 %v863, 72
          %v873 = vadd.s32 %v863, 80
          %v874 = vadd.s32 %v863, 88
          %v875 = vadd.s32 %v863, 96
          %v876 = vadd.s32 %v863, 104
          %v877 = vadd.s32 %v863, 112
          %v878 = vadd.s32 %v863, 120
          %v879 = vlaneseq
          %v880 = vand.u32 %v879, 127
          %vm881 = vcmp.eq.s32.totalorder %v863, %v880
          %vm882 = vcmp.eq.s32.totalorder %v864, %v880
          %vm883 = vcmp.eq.s32.totalorder %v865, %v880
          %vm884 = vcmp.eq.s32.totalorder %v866, %v880
          %vm885 = vcmp.eq.s32.totalorder %v867, %v880
          %vm886 = vcmp.eq.s32.totalorder %v868, %v880
          %vm887 = vcmp.eq.s32.totalorder %v869, %v880
          %vm888 = vcmp.eq.s32.totalorder %v870, %v880
          %vm889 = vcmp.eq.s32.totalorder %v871, %v880
          %vm890 = vcmp.eq.s32.totalorder %v872, %v880
          %vm891 = vcmp.eq.s32.totalorder %v873, %v880
          %vm892 = vcmp.eq.s32.totalorder %v874, %v880
          %vm893 = vcmp.eq.s32.totalorder %v875, %v880
          %vm894 = vcmp.eq.s32.totalorder %v876, %v880
          %vm895 = vcmp.eq.s32.totalorder %v877, %v880
          %vm896 = vcmp.eq.s32.totalorder %v878, %v880
          %v898 = vperm.slane %v513, 0
          %v900 = vsel %vm881, %v898, 0.0
          %v901 = vsel %vm882, %v898, 0.0
          %v902 = vsel %vm883, %v898, 0.0
          %v903 = vsel %vm884, %v898, 0.0
          %v904 = vsel %vm885, %v898, 0.0
          %v905 = vsel %vm886, %v898, 0.0
          %v906 = vsel %vm887, %v898, 0.0
          %v907 = vsel %vm888, %v898, 0.0
          %v908 = vsel %vm889, %v898, 0.0
          %v909 = vsel %vm890, %v898, 0.0
          %v910 = vsel %vm891, %v898, 0.0
          %v911 = vsel %vm892, %v898, 0.0
          %v912 = vsel %vm893, %v898, 0.0
          %v913 = vsel %vm894, %v898, 0.0
          %v914 = vsel %vm895, %v898, 0.0
          %v915 = vsel %vm896, %v898, 0.0
          %916 = vmatpush.msra.mxu0 %v915
          %917 = vmatpush.msra.mxu0 %v914
          %918 = vmatpush.msra.mxu0 %v913
          %919 = vmatpush.msra.mxu0 %v912
          %920 = vmatpush.msra.mxu0 %v911
          %921 = vmatpush.msra.mxu0 %v910
          %922 = vmatpush.msra.mxu0 %v909
          %923 = vmatpush.msra.mxu0 %v908
          %924 = vmatpush.msra.mxu0 %v907
          %925 = vmatpush.msra.mxu0 %v906
          %926 = vmatpush.msra.mxu0 %v905
          %927 = vmatpush.msra.mxu0 %v904
          %928 = vmatpush.msra.mxu0 %v903
          %929 = vmatpush.msra.mxu0 %v902
          %930 = vmatpush.msra.mxu0 %v901
          %931 = vmatpush.msra.mxu0 %v900
          %932 = vmatmul.f32.gmra.mxu0 %v846
          %v933 = vpop.f32.mrf.mxu0
          %v934 = vadd.f32 0.0, %v933
          %935 = vmatmul.f32.gmra.mxu0 %v847
          %v936 = vpop.f32.mrf.mxu0
          %v937 = vadd.f32 0.0, %v936
          %938 = vmatmul.f32.gmra.mxu0 %v848
          %v939 = vpop.f32.mrf.mxu0
          %v940 = vadd.f32 0.0, %v939
          %941 = vmatmul.f32.gmra.mxu0 %v849
          %v942 = vpop.f32.mrf.mxu0
          %v943 = vadd.f32 0.0, %v942
          %944 = vmatmul.f32.gmra.mxu0 %v850
          %v945 = vpop.f32.mrf.mxu0
          %v946 = vadd.f32 0.0, %v945
          %947 = vmatmul.f32.gmra.mxu0 %v851
          %v948 = vpop.f32.mrf.mxu0
          %v949 = vadd.f32 0.0, %v948
          %950 = vmatmul.f32.gmra.mxu0 %v852
          %v951 = vpop.f32.mrf.mxu0
          %v952 = vadd.f32 0.0, %v951
          %953 = vmatmul.f32.gmra.mxu0 %v853
          %v954 = vpop.f32.mrf.mxu0
          %v955 = vadd.f32 0.0, %v954
          %956 = vmatmul.f32.gmra.mxu0 %v854
          %v957 = vpop.f32.mrf.mxu0
          %v958 = vadd.f32 0.0, %v957
          %959 = vmatmul.f32.gmra.mxu0 %v855
          %v960 = vpop.f32.mrf.mxu0
          %v961 = vadd.f32 0.0, %v960
          %962 = vmatmul.f32.gmra.mxu0 %v856
          %v963 = vpop.f32.mrf.mxu0
          %v964 = vadd.f32 0.0, %v963
          %965 = vmatmul.f32.gmra.mxu0 %v857
          %v966 = vpop.f32.mrf.mxu0
          %v967 = vadd.f32 0.0, %v966
          %968 = vmatmul.f32.gmra.mxu0 %v858
          %v969 = vpop.f32.mrf.mxu0
          %v970 = vadd.f32 0.0, %v969
          %971 = vmatmul.f32.gmra.mxu0 %v859
          %v972 = vpop.f32.mrf.mxu0
          %v973 = vadd.f32 0.0, %v972
          %974 = vmatmul.f32.gmra.mxu0 %v860
          %v975 = vpop.f32.mrf.mxu0
          %v976 = vadd.f32 0.0, %v975
          %977 = vmatmul.f32.gmra.mxu0 %v861
          %v978 = vpop.f32.mrf.mxu0
          %v979 = vadd.f32 0.0, %v978
          %980 = vdwg.mxu0
          %981 = vmatpush.msra.mxu0 %v979
          %982 = vmatpush.msra.mxu0 %v976
          %983 = vmatpush.msra.mxu0 %v973
          %984 = vmatpush.msra.mxu0 %v970
          %985 = vmatpush.msra.mxu0 %v967
          %986 = vmatpush.msra.mxu0 %v964
          %987 = vmatpush.msra.mxu0 %v961
          %988 = vmatpush.msra.mxu0 %v958
          %989 = vmatpush.msra.mxu0 %v955
          %990 = vmatpush.msra.mxu0 %v952
          %991 = vmatpush.msra.mxu0 %v949
          %992 = vmatpush.msra.mxu0 %v946
          %993 = vmatpush.msra.mxu0 %v943
          %994 = vmatpush.msra.mxu0 %v940
          %995 = vmatpush.msra.mxu0 %v937
          %996 = vmatpush.msra.mxu0 %v934
          %997 = vmatmul.f32.gmra.mxu0 %v900
          %v998 = vpop.f32.mrf.mxu0
          %v999 = vadd.f32 0.0, %v998
          %1000 = vmatmul.f32.gmra.mxu0 %v901
          %v1001 = vpop.f32.mrf.mxu0
          %v1002 = vadd.f32 0.0, %v1001
          %1003 = vmatmul.f32.gmra.mxu0 %v902
          %v1004 = vpop.f32.mrf.mxu0
          %v1005 = vadd.f32 0.0, %v1004
          %1006 = vmatmul.f32.gmra.mxu0 %v903
          %v1007 = vpop.f32.mrf.mxu0
          %v1008 = vadd.f32 0.0, %v1007
          %1009 = vmatmul.f32.gmra.mxu0 %v904
          %v1010 = vpop.f32.mrf.mxu0
          %v1011 = vadd.f32 0.0, %v1010
          %1012 = vmatmul.f32.gmra.mxu0 %v905
          %v1013 = vpop.f32.mrf.mxu0
          %v1014 = vadd.f32 0.0, %v1013
          %1015 = vmatmul.f32.gmra.mxu0 %v906
          %v1016 = vpop.f32.mrf.mxu0
          %v1017 = vadd.f32 0.0, %v1016
          %1018 = vmatmul.f32.gmra.mxu0 %v907
          %v1019 = vpop.f32.mrf.mxu0
          %v1020 = vadd.f32 0.0, %v1019
          %1021 = vmatmul.f32.gmra.mxu0 %v908
          %v1022 = vpop.f32.mrf.mxu0
          %v1023 = vadd.f32 0.0, %v1022
          %1024 = vmatmul.f32.gmra.mxu0 %v909
          %v1025 = vpop.f32.mrf.mxu0
          %v1026 = vadd.f32 0.0, %v1025
          %1027 = vmatmul.f32.gmra.mxu0 %v910
          %v1028 = vpop.f32.mrf.mxu0
          %v1029 = vadd.f32 0.0, %v1028
          %1030 = vmatmul.f32.gmra.mxu0 %v911
          %v1031 = vpop.f32.mrf.mxu0
          %v1032 = vadd.f32 0.0, %v1031
          %1033 = vmatmul.f32.gmra.mxu0 %v912
          %v1034 = vpop.f32.mrf.mxu0
          %v1035 = vadd.f32 0.0, %v1034
          %1036 = vmatmul.f32.gmra.mxu0 %v913
          %v1037 = vpop.f32.mrf.mxu0
          %v1038 = vadd.f32 0.0, %v1037
          %1039 = vmatmul.f32.gmra.mxu0 %v914
          %v1040 = vpop.f32.mrf.mxu0
          %v1041 = vadd.f32 0.0, %v1040
          %1042 = vmatmul.f32.gmra.mxu0 %v915
          %v1043 = vpop.f32.mrf.mxu0
          %v1044 = vadd.f32 0.0, %v1043
          %1045 = vdwg.mxu0
          %v1046 = vrcp.pop 200.0
          %v1047 = vmul.f32 200.0, %v1046
          %v1048 = vsub.f32 1.0, %v1047
          %v1049 = vmul.f32 %v1046, %v1048
          %v1050 = vadd.f32 %v1046, %v1049
          %vm1051 = vweird.f32 %v1046
          %v1052 = vsel %vm1051, %v1046, %v1050
          %v1053 = vmul.f32 %v999, %v1052
          %v1054 = vmul.f32 %v1002, %v1052
          %v1055 = vmul.f32 %v1005, %v1052
          %v1056 = vmul.f32 %v1008, %v1052
          %v1057 = vmul.f32 %v1011, %v1052
          %v1058 = vmul.f32 %v1014, %v1052
          %v1059 = vmul.f32 %v1017, %v1052
          %v1060 = vmul.f32 %v1020, %v1052
          %v1061 = vmul.f32 %v1023, %v1052
          %v1062 = vmul.f32 %v1026, %v1052
          %v1063 = vmul.f32 %v1029, %v1052
          %v1064 = vmul.f32 %v1032, %v1052
          %v1065 = vmul.f32 %v1035, %v1052
          %v1066 = vmul.f32 %v1038, %v1052
          %v1067 = vmul.f32 %v1041, %v1052
          %v1068 = vmul.f32 %v1044, %v1052
          %v1069 = vsel %vm881, 1.0, 0.0
          %v1070 = vsel %vm882, 1.0, 0.0
          %v1071 = vsel %vm883, 1.0, 0.0
          %v1072 = vsel %vm884, 1.0, 0.0
          %v1073 = vsel %vm885, 1.0, 0.0
          %v1074 = vsel %vm886, 1.0, 0.0
          %v1075 = vsel %vm887, 1.0, 0.0
          %v1076 = vsel %vm888, 1.0, 0.0
          %v1077 = vsel %vm889, 1.0, 0.0
          %v1078 = vsel %vm890, 1.0, 0.0
          %v1079 = vsel %vm891, 1.0, 0.0
          %v1080 = vsel %vm892, 1.0, 0.0
          %v1081 = vsel %vm893, 1.0, 0.0
          %v1082 = vsel %vm894, 1.0, 0.0
          %v1083 = vsel %vm895, 1.0, 0.0
          %v1084 = vsel %vm896, 1.0, 0.0
          %v1085 = vsel %vm881, 1.0, 0.005
          %v1086 = vsel %vm882, 1.0, 0.005
          %v1087 = vsel %vm883, 1.0, 0.005
          %v1088 = vsel %vm884, 1.0, 0.005
          %v1089 = vsel %vm885, 1.0, 0.005
          %v1090 = vsel %vm886, 1.0, 0.005
          %v1091 = vsel %vm887, 1.0, 0.005
          %v1092 = vsel %vm888, 1.0, 0.005
          %v1093 = vsel %vm889, 1.0, 0.005
          %v1094 = vsel %vm890, 1.0, 0.005
          %v1095 = vsel %vm891, 1.0, 0.005
          %v1096 = vsel %vm892, 1.0, 0.005
          %v1097 = vsel %vm893, 1.0, 0.005
          %v1098 = vsel %vm894, 1.0, 0.005
          %v1099 = vsel %vm895, 1.0, 0.005
          %v1100 = vsel %vm896, 1.0, 0.005
          %v1101 = vsub.f32 %v1053, %v1069
          %v1102 = vsub.f32 %v1054, %v1070
          %v1103 = vsub.f32 %v1055, %v1071
          %v1104 = vsub.f32 %v1056, %v1072
          %v1105 = vsub.f32 %v1057, %v1073
          %v1106 = vsub.f32 %v1058, %v1074
          %v1107 = vsub.f32 %v1059, %v1075
          %v1108 = vsub.f32 %v1060, %v1076
          %v1109 = vsub.f32 %v1061, %v1077
          %v1110 = vsub.f32 %v1062, %v1078
          %v1111 = vsub.f32 %v1063, %v1079
          %v1112 = vsub.f32 %v1064, %v1080
          %v1113 = vsub.f32 %v1065, %v1081
          %v1114 = vsub.f32 %v1066, %v1082
          %v1115 = vsub.f32 %v1067, %v1083
          %v1116 = vsub.f32 %v1068, %v1084
          %v1117 = vmul.f32 %v1101, %v1101
          %v1118 = vmul.f32 %v1102, %v1102
          %v1119 = vmul.f32 %v1103, %v1103
          %v1120 = vmul.f32 %v1104, %v1104
          %v1121 = vmul.f32 %v1105, %v1105
          %v1122 = vmul.f32 %v1106, %v1106
          %v1123 = vmul.f32 %v1107, %v1107
          %v1124 = vmul.f32 %v1108, %v1108
          %v1125 = vmul.f32 %v1109, %v1109
          %v1126 = vmul.f32 %v1110, %v1110
          %v1127 = vmul.f32 %v1111, %v1111
          %v1128 = vmul.f32 %v1112, %v1112
          %v1129 = vmul.f32 %v1113, %v1113
          %v1130 = vmul.f32 %v1114, %v1114
          %v1131 = vmul.f32 %v1115, %v1115
          %v1132 = vmul.f32 %v1116, %v1116
          %v1133 = vmul.f32 %v1117, %v1085
          %v1134 = vmul.f32 %v1118, %v1086
          %v1135 = vmul.f32 %v1119, %v1087
          %v1136 = vmul.f32 %v1120, %v1088
          %v1137 = vmul.f32 %v1121, %v1089
          %v1138 = vmul.f32 %v1122, %v1090
          %v1139 = vmul.f32 %v1123, %v1091
          %v1140 = vmul.f32 %v1124, %v1092
          %v1141 = vmul.f32 %v1125, %v1093
          %v1142 = vmul.f32 %v1126, %v1094
          %v1143 = vmul.f32 %v1127, %v1095
          %v1144 = vmul.f32 %v1128, %v1096
          %v1145 = vmul.f32 %v1129, %v1097
          %v1146 = vmul.f32 %v1130, %v1098
          %v1147 = vmul.f32 %v1131, %v1099
          %v1148 = vmul.f32 %v1132, %v1100
          %v1149 = vadd.f32 %v1133, %v1134
          %v1150 = vadd.f32 %v1149, %v1135
          %v1151 = vadd.f32 %v1150, %v1136
          %v1152 = vadd.f32 %v1151, %v1137
          %v1153 = vadd.f32 %v1152, %v1138
          %v1154 = vadd.f32 %v1153, %v1139
          %v1155 = vadd.f32 %v1154, %v1140
          %v1156 = vadd.f32 %v1155, %v1141
          %v1157 = vadd.f32 %v1156, %v1142
          %v1158 = vadd.f32 %v1157, %v1143
          %v1159 = vadd.f32 %v1158, %v1144
          %v1160 = vadd.f32 %v1159, %v1145
          %v1161 = vadd.f32 %v1160, %v1146
          %v1162 = vadd.f32 %v1161, %v1147
          %v1163 = vadd.f32 %v1162, %v1148
          %1164 = vadd.xlane.f32.xlu0 %v1163
          %v1165 = vpop.xlane.xlu0 %1164
          %v1166 = vrot.slane %v1165, 4
          %v1167 = vadd.f32 %v1165, %v1166
          %v1168 = vrot.slane %v1167, 2
          %v1169 = vadd.f32 %v1167, %v1168
          %v1170 = vrot.slane %v1169, 1
          %v1171 = vadd.f32 %v1169, %v1170
          %s1172 = vtos %v1171
          %v1173 = vlog2.pop %v498
          %v1174 = vmul.f32 %v1173, 0.6931472
          %v1175 = vsub.f32 0.0, %v1174
          %v1176 = vmul.f32 %v498, %v498
          %v1177 = vmul.f32 %v473, %v473
          %v1178 = vadd.f32 %v1176, %v1177
          %v1179 = vmul.f32 %v1178, 0.5
          %v1180 = vadd.f32 %v1175, %v1179
          %v1181 = vsub.f32 %v1180, 0.5
          %v1182 = vsel %vm611, %v1181, 0.0
          %1183 = vadd.xlane.f32.xlu0 %v1182
          %v1184 = vpop.xlane.xlu0 %1183
          %v1185 = vrot.slane %v1184, 4
          %v1186 = vadd.f32 %v1184, %v1185
          %v1187 = vrot.slane %v1186, 2
          %v1188 = vadd.f32 %v1186, %v1187
          %v1189 = vrot.slane %v1188, 1
          %v1190 = vadd.f32 %v1188, %v1189
          %s1191 = vtos %v1190
          %v1192 = vrcp.pop 128.0
          %v1193 = vmul.f32 128.0, %v1192
          %v1194 = vsub.f32 1.0, %v1193
          %v1195 = vmul.f32 %v1192, %v1194
          %v1196 = vadd.f32 %v1192, %v1195
          %vm1197 = vweird.f32 %v1192
          %v1198 = vsel %vm1197, %v1192, %v1196
          %s1199 = vtos %v1198
          %s1200 = smul.f32 %s1191, %s1199
          %s1201 = smul.f32 %s1200, 0.1
          %s1202 = sadd.f32 %s1172, %s1201
          %v1203 = vstv %s1202
          %vm1204 = vcmask 0
          %1205 = vst.msk [vmem:[#allocation6] sm:$0x1] %vm1204, %v1203
        $region36: #{barlow_twins_loss.1} parent=27 // pred_fallthru
          _
        // Predicated region
        $region37: #{barlow_twins_loss.1} parent=27 // pred_check
          %p1206 = pneg %p79
        $region38: #{barlow_twins_loss.1} parent=27 // pred_check_branch
          %1208 = sbr.rel (%p1206) target = $region40
        $region39: #{barlow_twins_loss.1} parent=27 // pred_region
          %1210 = vsyncadd [#allocation7], 0
          %s1212 = sshll.u32 [#allocation6], 4
          %s1213 = int_to_ptr.vmem [resolvable:$true] %s1212
          %s1214 = sshll.u32 %s2, 4
          %s1215 = int_to_ptr.hbm [resolvable:$true] %s1214
          %1217 = dma.vmem_to_hbm [thread:$0]  %s1213, 16, %s1215, [#allocation7]
        $region40: #{barlow_twins_loss.1} parent=27 // pred_fallthru
          _
        // Predicated region
        $region41: #{barlow_twins_loss.1} parent=27 // pred_check
          %p1218 = pneg %p79
        $region42: #{barlow_twins_loss.1} parent=27 // pred_check_branch
          %1220 = sbr.rel (%p1218) target = $region44
        $region43: #{barlow_twins_loss.1} parent=27 // pred_region
          %1222 = dma.done [#allocation7], 16
        $region44: #{barlow_twins_loss.1} parent=27 // pred_fallthru
          _
      $region28: #{barlow_twins_loss.1} parent=5 // pred_fallthru
        _
      %p1223 = scmp.le.s32.totalorder 2, %s9
      // Predicated region
      $region45: #{barlow_twins_loss.1} parent=5 // pred_check
        %p1224 = pneg %p1223
      $region46: #{barlow_twins_loss.1} parent=5 // pred_check_branch
        %1226 = sbr.rel (%p1224) target = $region48
      $region47: #{barlow_twins_loss.1} parent=5 // pred_region
        %s1227 = ssub.s32 %s9, 2
      $region48: #{barlow_twins_loss.1} parent=5 // pred_fallthru
        _
    $region6: #{barlow_twins_loss.1} parent=1 // loop_footer
      %s13 = sadd.s32 1, %s9
    $region7: #{barlow_twins_loss.1} parent=1 // loop_footer_branch
      %8 = sbr.rel target = $region3
    $region8: #{barlow_twins_loss.1} parent=1 // loop_exit
      _
    %1228 = vsyncpa [#allocation7], 1
    %s1229 = scalar_lea.sflag [#allocation7], 1
    %1230 = vsyncpa %s1229, 1

</llo_original>
